<compile_context>
chip_gen: v6e
topology: v6e:2x2x1
jax: 0.10.0
libtpu: 0.0.40
codegen_flags: <defaults>
</compile_context>

<pallas_src>
import jax
import jax.numpy as jnp
from jax.experimental import pallas as pl
from jax.experimental.pallas import tpu as pltpu


def mlp_kernel(x_ref, w1_ref, b1_ref, w2_ref, b2_ref, o_ref):
    # Layer 1 on the MXU: cast f32 -> bf16 in-kernel (x is streamed from HBM
    # as f32 exactly once), accumulate in f32.
    h = jnp.dot(
        x_ref[...].astype(jnp.bfloat16),
        w1_ref[...].astype(jnp.bfloat16),
        preferred_element_type=jnp.float32,
    )
    # Bias + ReLU in f32 on the VPU (v5e has no bf16 VPU path).
    h = jnp.maximum(h + b1_ref[...], 0.0)
    # Layer 2 (H -> 1), produced lane-dense as a (1, TB) row by contracting on
    # H, so the output store is an unmasked, full-lane-width vst.
    y = jax.lax.dot_general(
        w2_ref[...], h,
        dimension_numbers=(((1,), (1,)), ((), ())),
        preferred_element_type=jnp.float32,
    )                                                   # (1, TB)
    o_ref[...] = (y + b2_ref[0, 0]).astype(o_ref.dtype)


def net_forward(x, w1, b1, w2, b2, *, block_b=2048):
    """x: (B, F) f32; w1: (F, H); b1: (H,)|(1,H); w2: (H,1)|(1,H); b2: scalar-ish."""
    B, F = x.shape
    H = w1.shape[1]

    # --- batch tile selection ------------------------------------------------
    # Cap TB so the double-buffered f32 x tile stays <= ~24 MiB (safe against
    # v7x's 64 MiB physical VMEM; trivially safe on v5e/v6e).
    cap = max(128, ((24 << 20) // (2 * F * 4)) // 128 * 128)
    block_b = min(block_b, cap)
    if B <= 128:
        TB = B  # single tile; block dims equal full array dims
    else:
        # >= 2 grid steps (keeps both v7x TensorCores busy) and TB a multiple
        # of 128 so the lane-dense (1, TB) output block is legal for any
        # number of tiles.
        TB = min(block_b, pl.cdiv(pl.cdiv(B, 2), 128) * 128)
    num_tiles = pl.cdiv(B, TB)
    out_cols = num_tiles * TB  # padded width; trimmed to B below

    b1_row = jnp.asarray(b1, jnp.float32).reshape(1, H)
    w2_row = jnp.asarray(w2, jnp.float32).reshape(1, H)
    b2_s = jnp.asarray(b2, jnp.float32).reshape(1, 1)
    x32 = x.astype(jnp.float32)
    w1_32 = w1.astype(jnp.float32)

    cost = pl.CostEstimate(
        flops=2 * B * F * H + 2 * B * H + 2 * B * H,   # L1 matmul + bias/relu + L2
        transcendentals=0,
        bytes_accessed=B * F * 4 + F * H * 4 + 2 * H * 4 + 4 + B * 4,  # f32 x stream
    )

    vmem_bytes = (
        2 * TB * F * 4      # double-buffered f32 x tile
        + 2 * F * H * 4     # resident W1
        + 2 * TB * 4        # double-buffered (1, TB) output
        + 2 * TB * H * 4    # layer-1 intermediate headroom
        + (2 << 20)         # misc headroom
    )
    vmem_limit = int(min(max(vmem_bytes, 16 << 20), 48 << 20))

    out = pl.pallas_call(
        mlp_kernel,
        out_shape=jax.ShapeDtypeStruct((1, out_cols), jnp.float32),
        grid=(num_tiles,),
        in_specs=[
            pl.BlockSpec((TB, F), lambda i: (i, 0)),   # x tile: pipelined over batch
            pl.BlockSpec((F, H), lambda i: (0, 0)),    # W1: VMEM-resident
            pl.BlockSpec((1, H), lambda i: (0, 0)),    # b1 row: resident
            pl.BlockSpec((1, H), lambda i: (0, 0)),    # w2 row: resident
            pl.BlockSpec(memory_space=pltpu.MemorySpace.SMEM),  # b2 scalar
        ],
        out_specs=pl.BlockSpec((1, TB), lambda i: (0, i)),
        compiler_params=pltpu.CompilerParams(
            dimension_semantics=("parallel",),
            vmem_limit_bytes=vmem_limit,
        ),
        cost_estimate=cost,
    )(x32, w1_32, b1_row, w2_row, b2_s)

    # Columns past B in the padded last tile are garbage by construction; trim
    # and restore the (B, 1) PyTorch output shape.
    return out.reshape(-1)[:B].reshape(B, 1)


def init_params(key, in_features, hidden=64, out_features=1, dtype=jnp.float32):
    # Mimics PyTorch's default U(-1/sqrt(fan_in), 1/sqrt(fan_in)) init.
    k1, k2, k3, k4 = jax.random.split(key, 4)
    bound1 = 1.0 / (in_features ** 0.5)
    bound2 = 1.0 / (hidden ** 0.5)
    w1 = jax.random.uniform(k1, (in_features, hidden), dtype, -bound1, bound1)
    b1 = jax.random.uniform(k2, (1, hidden), dtype, -bound1, bound1)
    w2 = jax.random.uniform(k3, (1, hidden), dtype, -bound2, bound2)  # pre-packed row
    b2 = jax.random.uniform(k4, (1, 1), dtype, -bound2, bound2)
    return w1, b1, w2, b2


if __name__ == "__main__":
    key = jax.random.PRNGKey(0)
    kx, kp = jax.random.split(key)

    # Small shapes; B=300 exercises a 2-step grid with a padded last tile.
    B, F, H = 300, 32, 64
    x = jax.random.normal(kx, (B, F), dtype=jnp.float32)
    w1, b1, w2, b2 = init_params(kp, F, hidden=H)

    out = net_forward(x, w1, b1, w2, b2)
    out = jax.block_until_ready(out)
    assert out.shape == (B, 1)

    # Reference in plain JAX using the same bf16-rounded MXU operands.
    x_r = x.astype(jnp.bfloat16).astype(jnp.float32)
    w1_r = w1.astype(jnp.bfloat16).astype(jnp.float32)
    h_ref = jnp.maximum(
        jax.lax.dot(x_r, w1_r, precision=jax.lax.Precision.HIGHEST) + b1, 0.0)
    ref = jnp.sum(h_ref * w2, axis=-1, keepdims=True) + b2
    assert jnp.allclose(out, ref, atol=1e-3, rtol=1e-3)

    print("KERNEL_OK")
</pallas_src>

<mosaic_0001>
module attributes {stable_mosaic.version = 11 : i64} {
  func.func @mlp_kernel(%arg0: i32, %arg1: memref<256x32xf32, #tpu.memory_space<vmem>>, %arg2: memref<32x64xf32, #tpu.memory_space<vmem>>, %arg3: memref<1x64xf32, #tpu.memory_space<vmem>>, %arg4: memref<1x64xf32, #tpu.memory_space<vmem>>, %arg5: memref<1x1xf32, #tpu.memory_space<smem>>, %arg6: memref<1x256xf32, #tpu.memory_space<vmem>>) attributes {dimension_semantics = [#tpu.dimension_semantics<parallel>], iteration_bounds = array<i64: 2>, scalar_prefetch = 0 : i64, scratch_operands = 0 : i64, tpu.core_type = #tpu.core_type<tc>, window_params = [{transform_indices = @transform_0, window_bounds = array<i64: 256, 32>}, {pipeline_mode = #tpu.pipeline_mode<synchronous>, transform_indices = @transform_1, window_bounds = array<i64: 32, 64>}, {pipeline_mode = #tpu.pipeline_mode<synchronous>, transform_indices = @transform_2, window_bounds = array<i64: 1, 64>}, {pipeline_mode = #tpu.pipeline_mode<synchronous>, transform_indices = @transform_3, window_bounds = array<i64: 1, 64>}, {transform_indices = @transform_4, window_bounds = array<i64: 1, 1>}, {transform_indices = @transform_5, window_bounds = array<i64: 1, 256>}]} {
    %c0 = arith.constant 0 : index
    %c0_0 = arith.constant 0 : index
    %0 = vector.load %arg1[%c0, %c0_0] : memref<256x32xf32, #tpu.memory_space<vmem>>, vector<256x32xf32>
    %1 = arith.truncf %0 : vector<256x32xf32> to vector<256x32xbf16>
    %c0_1 = arith.constant 0 : index
    %c0_2 = arith.constant 0 : index
    %2 = vector.load %arg2[%c0_1, %c0_2] : memref<32x64xf32, #tpu.memory_space<vmem>>, vector<32x64xf32>
    %3 = arith.truncf %2 : vector<32x64xf32> to vector<32x64xbf16>
    %cst = arith.constant dense<0.000000e+00> : vector<256x64xf32>
    %4 = tpu.matmul %1, %3, %cst {dimension_numbers = #tpu.dot_dimension_numbers<[1], [0], [0], [1], [0, 0, 1, 1], [], []>} : vector<256x32xbf16>, vector<32x64xbf16>, vector<256x64xf32> -> vector<256x64xf32>
    %c0_3 = arith.constant 0 : index
    %c0_4 = arith.constant 0 : index
    %5 = vector.load %arg3[%c0_3, %c0_4] : memref<1x64xf32, #tpu.memory_space<vmem>>, vector<1x64xf32>
    %6 = vector.broadcast %5 : vector<1x64xf32> to vector<256x64xf32>
    %7 = arith.addf %4, %6 : vector<256x64xf32>
    %cst_5 = arith.constant 0.000000e+00 : f32
    %8 = vector.broadcast %cst_5 : f32 to vector<256x64xf32>
    %9 = arith.maximumf %7, %8 : vector<256x64xf32>
    %c0_6 = arith.constant 0 : index
    %c0_7 = arith.constant 0 : index
    %10 = vector.load %arg4[%c0_6, %c0_7] : memref<1x64xf32, #tpu.memory_space<vmem>>, vector<1x64xf32>
    %cst_8 = arith.constant dense<0.000000e+00> : vector<1x256xf32>
    %11 = tpu.matmul %10, %9, %cst_8 {dimension_numbers = #tpu.dot_dimension_numbers<[1], [1], [0], [0], [0, 0, 1, 0], [], []>} : vector<1x64xf32>, vector<256x64xf32>, vector<1x256xf32> -> vector<1x256xf32>
    %c0_9 = arith.constant 0 : index
    %c0_10 = arith.constant 0 : index
    %12 = memref.load %arg5[%c0_9, %c0_10] : memref<1x1xf32, #tpu.memory_space<smem>>
    %13 = vector.broadcast %12 : f32 to vector<1x256xf32>
    %14 = arith.addf %11, %13 : vector<1x256xf32>
    %c0_11 = arith.constant 0 : index
    %c0_12 = arith.constant 0 : index
    %15 = vector.load %arg6[%c0_11, %c0_12] : memref<1x256xf32, #tpu.memory_space<vmem>>, vector<1x256xf32>
    tpu.vector_store %arg6[%c0_11, %c0_12], %14 {strides = array<i32>} : memref<1x256xf32, #tpu.memory_space<vmem>>, vector<1x256xf32>,
    return
  }
  func.func @transform_0(%arg0: i32) -> (i32, i32) {
    %c0_i32 = arith.constant 0 : i32
    %c0_i32_0 = arith.constant 0 : i32
    return %arg0, %c0_i32 : i32, i32
  }
  func.func @transform_1(%arg0: i32) -> (i32, i32) {
    %c0_i32 = arith.constant 0 : i32
    %c0_i32_0 = arith.constant 0 : i32
    %c0_i32_1 = arith.constant 0 : i32
    return %c0_i32, %c0_i32_0 : i32, i32
  }
  func.func @transform_2(%arg0: i32) -> (i32, i32) {
    %c0_i32 = arith.constant 0 : i32
    %c0_i32_0 = arith.constant 0 : i32
    %c0_i32_1 = arith.constant 0 : i32
    return %c0_i32, %c0_i32_0 : i32, i32
  }
  func.func @transform_3(%arg0: i32) -> (i32, i32) {
    %c0_i32 = arith.constant 0 : i32
    %c0_i32_0 = arith.constant 0 : i32
    %c0_i32_1 = arith.constant 0 : i32
    return %c0_i32, %c0_i32_0 : i32, i32
  }
  func.func @transform_4(%arg0: i32) -> (i32, i32) {
    %c0_i32 = arith.constant 0 : i32
    %c0_i32_0 = arith.constant 0 : i32
    %c0_i32_1 = arith.constant 0 : i32
    return %c0_i32, %c0_i32_0 : i32, i32
  }
  func.func @transform_5(%arg0: i32) -> (i32, i32) {
    %c0_i32 = arith.constant 0 : i32
    %c0_i32_0 = arith.constant 0 : i32
    return %c0_i32, %arg0 : i32, i32
  }
}

</mosaic_0001>

<llo_original>
// kernel: tpu_custom_call.1
$region0: #{tpu_custom_call.1}
  #allocation0 [shape = 'u32[]', space=smem, size = 0x4, offset = 0x4, fixed_abs, tag = 'smem constant byte address 0x4 - core index']
  #allocation1 [shape = 'u32[144,128]{1,0:T(1,128)}', space=vmem, size = 0x12000, scoped, tag = 'internal scratch']
  #allocation2 [shape = 'f32[1,1]{1,0:T(1,128)S(6)}', space=smem, size = 0x200, scoped, tag = 'scoped memory for tpu_custom_call.1']
  %s0 = inlined_call_operand.vmem [shape: f32[300,32], index: 0, kind: input, shape index: {}]
  %s1 = inlined_call_operand.vmem [shape: f32[32,64], index: 1, kind: input, shape index: {}]
  %s2 = inlined_call_operand.vmem [shape: f32[1,64], index: 2, kind: input, shape index: {}]
  %s3 = inlined_call_operand.vmem [shape: f32[1,64], index: 3, kind: input, shape index: {}]
  %s4 = inlined_call_operand.<no memory space> [shape: f32[1,1], index: 4, kind: input, shape index: {}]
  %s5 = inlined_call_operand.hbm [shape: f32[1,512], index: 5, kind: output, shape index: {}]
  %s6 = sld [smem:[#allocation0]]
  $region53: #{tpu_custom_call.1} parent=0
    _
  %s8 = ssub.s32 1, %s6
  %s9 = scalar_select 0, %s8, %s6
  %10 = sst [smem:[#allocation2]] %s4
  $region1: #{tpu_custom_call.1} parent=0
    #allocation3 [shape = 'u8[2048]{0}', space=vmem, size = 0x800, scoped, tag = 'output window, operand 0']
    #allocation4 [shape = 's32[2]{0}', space=sflag, size = 0x8, scoped, tag = 'scoped memory for tpu_custom_call.1']
    %11 = vsyncpa [#allocation4], 0
    %s12 = scalar_lea.sflag [#allocation4], 1
    %13 = vsyncpa %s12, 0
    loop: start=0, step=1, limit=4
    $region2: #{tpu_custom_call.1} parent=1 // loop_pre_header
      _
    $region3: #{tpu_custom_call.1} parent=1 // loop_header
      %s15 = sphi 0, %s19
      %p16 = scmp.ge.s32.totalorder %s15, 4
      %s25 = sphi 0, %s27
      %s28 = sphi 0, %s25
      %s29 = sphi 0, %s28
      %s45 = sphi 0, %s29
      %s49 = sphi 0, %s49
      %s51 = sphi 0, %s49
      %s52 = sphi 0, %s51
      %s66 = sphi 0, %s52
      %s70 = sphi 0, %s70
      %s72 = sphi 0, %s70
      %s73 = sphi 0, %s72
      %s87 = sphi 0, %s73
      %s91 = sphi 0, %s91
      %s93 = sphi 0, %s91
      %s94 = sphi 0, %s93
      %s108 = sphi 0, %s94
      %s112 = sphi 0, %s112
      %s114 = sphi 0, %s112
      %s115 = sphi 0, %s114
      %s129 = sphi 0, %s115
      %s135 = sphi 0, %s137
      %s138 = sphi 0, %s135
      %s139 = sphi 0, %s138
      %s155 = sphi 0, %s139
    $region4: #{tpu_custom_call.1} parent=1 // loop_header_branch
      %18 = sbr.rel (%p16) target = $region8
    $region5: #{tpu_custom_call.1} parent=1 // loop_body
      %s20 = ssub.s32 %s15, 1
      %s21 = ssub.s32 %s15, 2
      %s22 = sadd.s32 %s15, 1
      %s23 = ssub.s32 %s15, %s22
      %p24 = scmp.eq.s32.totalorder %s23, 0
      %s26 = sadd.s32 %s25, 1
      %s27 = scalar_select %p24, %s25, %s26
      %p30 = pneg %p24
      %p31 = scmp.eq.s32.totalorder %s15, 1
      %p32 = por %p30, %p31
      %p33 = scmp.ne.s32.totalorder %s25, %s28
      %p34 = scmp.eq.s32.totalorder %s15, 0
      %p35 = por %p33, %p34
      %p36 = scmp.ne.s32.totalorder %s25, %s28
      %p37 = scmp.eq.s32.totalorder %s20, 1
      %p38 = por %p36, %p37
      %p39 = scmp.ne.s32.totalorder %s28, %s29
      %p40 = scmp.eq.s32.totalorder %s20, 0
      %p41 = por %p39, %p40
      %p42 = scmp.ne.s32.totalorder %s28, %s29
      %p43 = scmp.eq.s32.totalorder %s21, 1
      %p44 = por %p42, %p43
      %p46 = scmp.ne.s32.totalorder %s29, %s45
      %p47 = scmp.eq.s32.totalorder %s21, 0
      %p48 = por %p46, %p47
      %s50 = sadd.s32 %s49, 1
      %p53 = scmp.eq.s32.totalorder %s15, 1
      %p54 = scmp.ne.s32.totalorder %s49, %s51
      %p55 = scmp.eq.s32.totalorder %s15, 0
      %p56 = por %p54, %p55
      %p57 = scmp.ne.s32.totalorder %s49, %s51
      %p58 = scmp.eq.s32.totalorder %s20, 1
      %p59 = por %p57, %p58
      %p60 = scmp.ne.s32.totalorder %s51, %s52
      %p61 = scmp.eq.s32.totalorder %s20, 0
      %p62 = por %p60, %p61
      %p63 = scmp.ne.s32.totalorder %s51, %s52
      %p64 = scmp.eq.s32.totalorder %s21, 1
      %p65 = por %p63, %p64
      %p67 = scmp.ne.s32.totalorder %s52, %s66
      %p68 = scmp.eq.s32.totalorder %s21, 0
      %p69 = por %p67, %p68
      %s71 = sadd.s32 %s70, 1
      %p74 = scmp.eq.s32.totalorder %s15, 1
      %p75 = scmp.ne.s32.totalorder %s70, %s72
      %p76 = scmp.eq.s32.totalorder %s15, 0
      %p77 = por %p75, %p76
      %p78 = scmp.ne.s32.totalorder %s70, %s72
      %p79 = scmp.eq.s32.totalorder %s20, 1
      %p80 = por %p78, %p79
      %p81 = scmp.ne.s32.totalorder %s72, %s73
      %p82 = scmp.eq.s32.totalorder %s20, 0
      %p83 = por %p81, %p82
      %p84 = scmp.ne.s32.totalorder %s72, %s73
      %p85 = scmp.eq.s32.totalorder %s21, 1
      %p86 = por %p84, %p85
      %p88 = scmp.ne.s32.totalorder %s73, %s87
      %p89 = scmp.eq.s32.totalorder %s21, 0
      %p90 = por %p88, %p89
      %s92 = sadd.s32 %s91, 1
      %p95 = scmp.eq.s32.totalorder %s15, 1
      %p96 = scmp.ne.s32.totalorder %s91, %s93
      %p97 = scmp.eq.s32.totalorder %s15, 0
      %p98 = por %p96, %p97
      %p99 = scmp.ne.s32.totalorder %s91, %s93
      %p100 = scmp.eq.s32.totalorder %s20, 1
      %p101 = por %p99, %p100
      %p102 = scmp.ne.s32.totalorder %s93, %s94
      %p103 = scmp.eq.s32.totalorder %s20, 0
      %p104 = por %p102, %p103
      %p105 = scmp.ne.s32.totalorder %s93, %s94
      %p106 = scmp.eq.s32.totalorder %s21, 1
      %p107 = por %p105, %p106
      %p109 = scmp.ne.s32.totalorder %s94, %s108
      %p110 = scmp.eq.s32.totalorder %s21, 0
      %p111 = por %p109, %p110
      %s113 = sadd.s32 %s112, 1
      %p116 = scmp.eq.s32.totalorder %s15, 1
      %p117 = scmp.ne.s32.totalorder %s112, %s114
      %p118 = scmp.eq.s32.totalorder %s15, 0
      %p119 = por %p117, %p118
      %p120 = scmp.ne.s32.totalorder %s112, %s114
      %p121 = scmp.eq.s32.totalorder %s20, 1
      %p122 = por %p120, %p121
      %p123 = scmp.ne.s32.totalorder %s114, %s115
      %p124 = scmp.eq.s32.totalorder %s20, 0
      %p125 = por %p123, %p124
      %p126 = scmp.ne.s32.totalorder %s114, %s115
      %p127 = scmp.eq.s32.totalorder %s21, 1
      %p128 = por %p126, %p127
      %p130 = scmp.ne.s32.totalorder %s115, %s129
      %p131 = scmp.eq.s32.totalorder %s21, 0
      %p132 = por %p130, %p131
      %s133 = ssub.s32 %s15, %s22
      %p134 = scmp.eq.s32.totalorder %s133, 0
      %s136 = sadd.s32 %s135, 1
      %s137 = scalar_select %p134, %s135, %s136
      %p140 = pneg %p134
      %p141 = scmp.eq.s32.totalorder %s15, 1
      %p142 = por %p140, %p141
      %p143 = scmp.ne.s32.totalorder %s135, %s138
      %p144 = scmp.eq.s32.totalorder %s15, 0
      %p145 = por %p143, %p144
      %p146 = scmp.ne.s32.totalorder %s135, %s138
      %p147 = scmp.eq.s32.totalorder %s20, 1
      %p148 = por %p146, %p147
      %p149 = scmp.ne.s32.totalorder %s138, %s139
      %p150 = scmp.eq.s32.totalorder %s20, 0
      %p151 = por %p149, %p150
      %p152 = scmp.ne.s32.totalorder %s138, %s139
      %p153 = scmp.eq.s32.totalorder %s21, 1
      %p154 = por %p152, %p153
      %p156 = scmp.ne.s32.totalorder %s139, %s155
      %p157 = scmp.eq.s32.totalorder %s21, 0
      %p158 = por %p156, %p157
      %p159 = scmp.le.s32.totalorder 1, %s15
      %p160 = scmp.lt.s32.totalorder %s15, 3
      %p161 = pnand %p159, %p160
      %p162 = pneg %p161
      // Predicated region
      $region9: #{tpu_custom_call.1} parent=5 // pred_check
        _
      $region10: #{tpu_custom_call.1} parent=5 // pred_check_branch
        %164 = sbr.rel (%p161) target = $region12
      $region11: #{tpu_custom_call.1} parent=5 // pred_region
        %s165 = ssub.s32 %s15, 1
        // Predicated region
        $region13: #{tpu_custom_call.1} parent=11 // pred_check
          %p166 = pneg %p62
        $region14: #{tpu_custom_call.1} parent=11 // pred_check_branch
          %168 = sbr.rel (%p166) target = $region16
        $region15: #{tpu_custom_call.1} parent=11 // pred_region
          _
        $region16: #{tpu_custom_call.1} parent=11 // pred_fallthru
          _
        // Predicated region
        $region17: #{tpu_custom_call.1} parent=11 // pred_check
          %p169 = pneg %p83
        $region18: #{tpu_custom_call.1} parent=11 // pred_check_branch
          %171 = sbr.rel (%p169) target = $region20
        $region19: #{tpu_custom_call.1} parent=11 // pred_region
          _
        $region20: #{tpu_custom_call.1} parent=11 // pred_fallthru
          _
        // Predicated region
        $region21: #{tpu_custom_call.1} parent=11 // pred_check
          %p172 = pneg %p104
        $region22: #{tpu_custom_call.1} parent=11 // pred_check_branch
          %174 = sbr.rel (%p172) target = $region24
        $region23: #{tpu_custom_call.1} parent=11 // pred_region
          _
        $region24: #{tpu_custom_call.1} parent=11 // pred_fallthru
          _
        // Predicated region
        $region25: #{tpu_custom_call.1} parent=11 // pred_check
          %p175 = pneg %p125
        $region26: #{tpu_custom_call.1} parent=11 // pred_check_branch
          %177 = sbr.rel (%p175) target = $region28
        $region27: #{tpu_custom_call.1} parent=11 // pred_region
          _
        $region28: #{tpu_custom_call.1} parent=11 // pred_fallthru
          _
      $region12: #{tpu_custom_call.1} parent=5 // pred_fallthru
        _
      %p178 = scmp.lt.s32.totalorder %s15, 2
      // Predicated region
      $region29: #{tpu_custom_call.1} parent=5 // pred_check
        %p179 = pneg %p178
      $region30: #{tpu_custom_call.1} parent=5 // pred_check_branch
        %181 = sbr.rel (%p179) target = $region32
      $region31: #{tpu_custom_call.1} parent=5 // pred_region
        // Predicated region
        $region33: #{tpu_custom_call.1} parent=31 // pred_check
          %p182 = pneg %p35
        $region34: #{tpu_custom_call.1} parent=31 // pred_check_branch
          %184 = sbr.rel (%p182) target = $region36
        $region35: #{tpu_custom_call.1} parent=31 // pred_region
          %s185 = smul.u32 32, %s15
          %s186 = ssub.s32 38, %s185
          %p187 = scmp.lt.s32.totalorder %s186, 32
          %s188 = scalar_select %p187, %s186, 32
          %s189 = smul.u32 128, %s188
          %p190 = scmp.lt.s32.totalorder %s185, 37
          %s191 = scalar_select %p190, %s185, 37
          %s192 = smul.addr %s191, 8
          %s193 = scalar_lea.vmem %s0, %s192
          %s194 = smul.u32 32, %s15
          %s195 = ssub.s32 38, %s194
          %p196 = scmp.lt.s32.totalorder %s195, 32
          %s197 = scalar_select %p196, %s195, 32
          %s198 = smul.u32 128, %s197
        $region36: #{tpu_custom_call.1} parent=31 // pred_fallthru
          _
      $region32: #{tpu_custom_call.1} parent=5 // pred_fallthru
        _
      %p199 = scmp.le.s32.totalorder 1, %s15
      %p200 = scmp.lt.s32.totalorder %s15, 3
      %p201 = pnand %p199, %p200
      %p202 = pneg %p201
      // Predicated region
      $region37: #{tpu_custom_call.1} parent=5 // pred_check
        _
      $region38: #{tpu_custom_call.1} parent=5 // pred_check_branch
        %204 = sbr.rel (%p201) target = $region40
      $region39: #{tpu_custom_call.1} parent=5 // pred_region
        %s205 = ssub.s32 %s15, 1
        %s206 = smul.u32 32, %s20
        %s207 = ssub.s32 38, %s206
        %p208 = scmp.lt.s32.totalorder %s207, 32
        %s209 = scalar_select %p208, %s207, 32
        %s210 = smul.u32 128, %s209
        %p211 = scmp.lt.s32.totalorder %s206, 37
        %s212 = scalar_select %p211, %s206, 37
        %s213 = smul.addr %s212, 8
        %s214 = scalar_lea.vmem %s0, %s213
        %p215 = pneg %p41
        %p216 = pneg %p38
        %p217 = pneg %p62
        %p218 = pneg %p59
        %p219 = pneg %p83
        %p220 = pneg %p80
        %p221 = pneg %p104
        %p222 = pneg %p101
        %p223 = pneg %p125
        %p224 = pneg %p122
        %p225 = pneg %p151
        %p226 = pneg %p148
        %s227 = sand.u32 %s138, 1
        %s228 = scalar_lea.sflag [#allocation4], %s227
        %s229 = sand.u32 %s138, 1
        %s230 = smul.addr %s229, 2
        %s231 = scalar_lea.vmem [#allocation3], %s230
        %s232 = smul.u32 32, %s20
        %s233 = ssub.s32 38, %s232
        %p234 = scmp.lt.s32.totalorder %s233, 32
        %s235 = scalar_select %p234, %s233, 32
        %s236 = smul.u32 128, %s235
        %p237 = scmp.lt.s32.totalorder %s232, 37
        %s238 = scalar_select %p237, %s232, 37
        %s239 = smul.addr %s238, 8
        %s240 = scalar_lea.vmem %s0, %s239
        %s241 = smul.u32 32, %s20
        %s242 = ssub.s32 38, %s241
        %p243 = scmp.lt.s32.totalorder %s242, 32
        %s244 = scalar_select %p243, %s242, 32
        %s245 = smul.u32 128, %s244
        %s246 = smul.u32 2, %s20
        %v248 = vld [vmem:[%s240] sm:$0xff]
        %v249 = vld [vmem:[%s240 + $0x8] sm:$0xff]
        %v250 = vld [vmem:[%s240 + $0x10] sm:$0xff]
        %v251 = vld [vmem:[%s240 + $0x18] sm:$0xff]
        %v252 = vld [vmem:[%s240 + $0x20] sm:$0xff]
        %v253 = vld [vmem:[%s240 + $0x28] sm:$0xff]
        %v254 = vld [vmem:[%s240 + $0x30] sm:$0xff]
        %v255 = vld [vmem:[%s240 + $0x38] sm:$0xff]
        %v256 = vld [vmem:[%s240 + $0x40] sm:$0xff]
        %v257 = vld [vmem:[%s240 + $0x48] sm:$0xff]
        %v258 = vld [vmem:[%s240 + $0x50] sm:$0xff]
        %v259 = vld [vmem:[%s240 + $0x58] sm:$0xff]
        %v260 = vld [vmem:[%s240 + $0x60] sm:$0xff]
        %v261 = vld [vmem:[%s240 + $0x68] sm:$0xff]
        %v262 = vld [vmem:[%s240 + $0x70] sm:$0xff]
        %v263 = vld [vmem:[%s240 + $0x78] sm:$0xff]
        %v264 = vld [vmem:[%s240 + $0x80] sm:$0xff]
        %v265 = vld [vmem:[%s240 + $0x88] sm:$0xff]
        %v266 = vld [vmem:[%s240 + $0x90] sm:$0xff]
        %v267 = vld [vmem:[%s240 + $0x98] sm:$0xff]
        %v268 = vld [vmem:[%s240 + $0xa0] sm:$0xff]
        %v269 = vld [vmem:[%s240 + $0xa8] sm:$0xff]
        %v270 = vld [vmem:[%s240 + $0xb0] sm:$0xff]
        %v271 = vld [vmem:[%s240 + $0xb8] sm:$0xff]
        %v272 = vld [vmem:[%s240 + $0xc0] sm:$0xff]
        %v273 = vld [vmem:[%s240 + $0xc8] sm:$0xff]
        %v274 = vld [vmem:[%s240 + $0xd0] sm:$0xff]
        %v275 = vld [vmem:[%s240 + $0xd8] sm:$0xff]
        %v276 = vld [vmem:[%s240 + $0xe0] sm:$0xff]
        %v277 = vld [vmem:[%s240 + $0xe8] sm:$0xff]
        %v278 = vld [vmem:[%s240 + $0xf0] sm:$0xff]
        %v279 = vld [vmem:[%s240 + $0xf8] sm:$0xff]
        %v280 = vpack.c.bf16 %v249, %v248
        %v281 = vpack.c.bf16 %v251, %v250
        %v282 = vpack.c.bf16 %v253, %v252
        %v283 = vpack.c.bf16 %v255, %v254
        %v284 = vpack.c.bf16 %v257, %v256
        %v285 = vpack.c.bf16 %v259, %v258
        %v286 = vpack.c.bf16 %v261, %v260
        %v287 = vpack.c.bf16 %v263, %v262
        %v288 = vpack.c.bf16 %v265, %v264
        %v289 = vpack.c.bf16 %v267, %v266
        %v290 = vpack.c.bf16 %v269, %v268
        %v291 = vpack.c.bf16 %v271, %v270
        %v292 = vpack.c.bf16 %v273, %v272
        %v293 = vpack.c.bf16 %v275, %v274
        %v294 = vpack.c.bf16 %v277, %v276
        %v295 = vpack.c.bf16 %v279, %v278
        %v296 = vld [vmem:[%s1] sm:$0xff]
        %v297 = vld [vmem:[%s1 + $0x8] sm:$0xff]
        %v298 = vld [vmem:[%s1 + $0x10] sm:$0xff]
        %v299 = vld [vmem:[%s1 + $0x18] sm:$0xff]
        %v300 = vpack.c.bf16 %v297, %v296
        %v301 = vpack.c.bf16 %v299, %v298
        %v302 = vld [vmem:[%s2] sm:$0x1]
        %v304 = vlaneseq
        %v305 = vshrl.u32 %v304, 7
        %v306 = vsub.s32 0, %v305
        %v307 = vrot.slane %v302, %v306
        %vm309 = vcmask 261120
        %v311 = vsel %vm309, %v280, 0
        %v314 = vsel %vm309, %v281, 0
        %v317 = vsel %vm309, %v282, 0
        %v320 = vsel %vm309, %v283, 0
        %v323 = vsel %vm309, %v284, 0
        %v326 = vsel %vm309, %v285, 0
        %v329 = vsel %vm309, %v286, 0
        %v332 = vsel %vm309, %v287, 0
        %v335 = vsel %vm309, %v288, 0
        %v338 = vsel %vm309, %v289, 0
        %v341 = vsel %vm309, %v290, 0
        %v344 = vsel %vm309, %v291, 0
        %v347 = vsel %vm309, %v292, 0
        %v350 = vsel %vm309, %v293, 0
        %v353 = vsel %vm309, %v294, 0
        %v356 = vsel %vm309, %v295, 0
        %358 = vmatprep.subr.bf16.mxu0 0
        %359 = vmatpush1.bf16.msra.mxu0 0
        %360 = vmatprep.subr.bf16.mxu0 0
        %361 = vmatpush1.bf16.msra.mxu0 0
        %362 = vmatprep.subr.bf16.mxu0 0
        %363 = vmatpush1.bf16.msra.mxu0 0
        %364 = vmatprep.subr.bf16.mxu0 0
        %365 = vmatpush1.bf16.msra.mxu0 0
        %366 = vmatprep.subr.bf16.mxu0 0
        %367 = vmatpush1.bf16.msra.mxu0 0
        %368 = vmatprep.subr.bf16.mxu0 0
        %369 = vmatpush1.bf16.msra.mxu0 0
        %370 = vmatprep.subr.bf16.mxu0 0
        %371 = vmatpush1.bf16.msra.mxu0 %v301
        %372 = vmatprep.subr.bf16.mxu0 0
        %373 = vmatpush1.bf16.msra.mxu0 %v300
        %374 = vmatprep.subr.bf16.mxu0 0
        %375 = vmatpush2.bf16.msra.mxu0 0
        %376 = vmatprep.subr.bf16.mxu0 0
        %377 = vmatpush2.bf16.msra.mxu0 0
        %378 = vmatprep.subr.bf16.mxu0 0
        %379 = vmatpush2.bf16.msra.mxu0 0
        %380 = vmatprep.subr.bf16.mxu0 0
        %381 = vmatpush2.bf16.msra.mxu0 0
        %382 = vmatprep.subr.bf16.mxu0 0
        %383 = vmatpush2.bf16.msra.mxu0 0
        %384 = vmatprep.subr.bf16.mxu0 0
        %385 = vmatpush2.bf16.msra.mxu0 0
        %386 = vmatprep.subr.bf16.mxu0 0
        %387 = vmatpush2.bf16.msra.mxu0 0
        %388 = vmatprep.subr.bf16.mxu0 0
        %389 = vmatpush2.bf16.msra.mxu0 0
        %390 = vmatprep.mubr.bf16.mxu0 0
        %391 = vmatmul.mubr.bf16.gmra.mxu0 %v311
        %v392 = vpop.f32.mrf.mxu0
        %v393 = vadd.f32 %v307, %v392
        %v394 = vpop.f32.mrf.mxu0
        %v395 = vpop.f32.mrf.mxu0
        %v396 = vadd.f32 %v307, %v395
        %v397 = vpop.f32.mrf.mxu0
        %398 = vmatprep.mubr.bf16.mxu0 0
        %399 = vmatmul.mubr.bf16.gmra.mxu0 %v314
        %v400 = vpop.f32.mrf.mxu0
        %v401 = vadd.f32 %v307, %v400
        %v402 = vpop.f32.mrf.mxu0
        %v403 = vpop.f32.mrf.mxu0
        %v404 = vadd.f32 %v307, %v403
        %v405 = vpop.f32.mrf.mxu0
        %406 = vmatprep.mubr.bf16.mxu0 0
        %407 = vmatmul.mubr.bf16.gmra.mxu0 %v317
        %v408 = vpop.f32.mrf.mxu0
        %v409 = vadd.f32 %v307, %v408
        %v410 = vpop.f32.mrf.mxu0
        %v411 = vpop.f32.mrf.mxu0
        %v412 = vadd.f32 %v307, %v411
        %v413 = vpop.f32.mrf.mxu0
        %414 = vmatprep.mubr.bf16.mxu0 0
        %415 = vmatmul.mubr.bf16.gmra.mxu0 %v320
        %v416 = vpop.f32.mrf.mxu0
        %v417 = vadd.f32 %v307, %v416
        %v418 = vpop.f32.mrf.mxu0
        %v419 = vpop.f32.mrf.mxu0
        %v420 = vadd.f32 %v307, %v419
        %v421 = vpop.f32.mrf.mxu0
        %422 = vmatprep.mubr.bf16.mxu0 0
        %423 = vmatmul.mubr.bf16.gmra.mxu0 %v323
        %v424 = vpop.f32.mrf.mxu0
        %v425 = vadd.f32 %v307, %v424
        %v426 = vpop.f32.mrf.mxu0
        %v427 = vpop.f32.mrf.mxu0
        %v428 = vadd.f32 %v307, %v427
        %v429 = vpop.f32.mrf.mxu0
        %430 = vmatprep.mubr.bf16.mxu0 0
        %431 = vmatmul.mubr.bf16.gmra.mxu0 %v326
        %v432 = vpop.f32.mrf.mxu0
        %v433 = vadd.f32 %v307, %v432
        %v434 = vpop.f32.mrf.mxu0
        %v435 = vpop.f32.mrf.mxu0
        %v436 = vadd.f32 %v307, %v435
        %v437 = vpop.f32.mrf.mxu0
        %438 = vmatprep.mubr.bf16.mxu0 0
        %439 = vmatmul.mubr.bf16.gmra.mxu0 %v329
        %v440 = vpop.f32.mrf.mxu0
        %v441 = vadd.f32 %v307, %v440
        %v442 = vpop.f32.mrf.mxu0
        %v443 = vpop.f32.mrf.mxu0
        %v444 = vadd.f32 %v307, %v443
        %v445 = vpop.f32.mrf.mxu0
        %446 = vmatprep.mubr.bf16.mxu0 0
        %447 = vmatmul.mubr.bf16.gmra.mxu0 %v332
        %v448 = vpop.f32.mrf.mxu0
        %v449 = vadd.f32 %v307, %v448
        %v450 = vpop.f32.mrf.mxu0
        %v451 = vpop.f32.mrf.mxu0
        %v452 = vadd.f32 %v307, %v451
        %v453 = vpop.f32.mrf.mxu0
        %454 = vmatprep.mubr.bf16.mxu0 0
        %455 = vmatmul.mubr.bf16.gmra.mxu0 %v335
        %v456 = vpop.f32.mrf.mxu0
        %v457 = vadd.f32 %v307, %v456
        %v458 = vpop.f32.mrf.mxu0
        %v459 = vpop.f32.mrf.mxu0
        %v460 = vadd.f32 %v307, %v459
        %v461 = vpop.f32.mrf.mxu0
        %462 = vmatprep.mubr.bf16.mxu0 0
        %463 = vmatmul.mubr.bf16.gmra.mxu0 %v338
        %v464 = vpop.f32.mrf.mxu0
        %v465 = vadd.f32 %v307, %v464
        %v466 = vpop.f32.mrf.mxu0
        %v467 = vpop.f32.mrf.mxu0
        %v468 = vadd.f32 %v307, %v467
        %v469 = vpop.f32.mrf.mxu0
        %470 = vmatprep.mubr.bf16.mxu0 0
        %471 = vmatmul.mubr.bf16.gmra.mxu0 %v341
        %v472 = vpop.f32.mrf.mxu0
        %v473 = vadd.f32 %v307, %v472
        %v474 = vpop.f32.mrf.mxu0
        %v475 = vpop.f32.mrf.mxu0
        %v476 = vadd.f32 %v307, %v475
        %v477 = vpop.f32.mrf.mxu0
        %478 = vmatprep.mubr.bf16.mxu0 0
        %479 = vmatmul.mubr.bf16.gmra.mxu0 %v344
        %v480 = vpop.f32.mrf.mxu0
        %v481 = vadd.f32 %v307, %v480
        %v482 = vpop.f32.mrf.mxu0
        %v483 = vpop.f32.mrf.mxu0
        %v484 = vadd.f32 %v307, %v483
        %v485 = vpop.f32.mrf.mxu0
        %486 = vmatprep.mubr.bf16.mxu0 0
        %487 = vmatmul.mubr.bf16.gmra.mxu0 %v347
        %v488 = vpop.f32.mrf.mxu0
        %v489 = vadd.f32 %v307, %v488
        %v490 = vpop.f32.mrf.mxu0
        %v491 = vpop.f32.mrf.mxu0
        %v492 = vadd.f32 %v307, %v491
        %v493 = vpop.f32.mrf.mxu0
        %494 = vmatprep.mubr.bf16.mxu0 0
        %495 = vmatmul.mubr.bf16.gmra.mxu0 %v350
        %v496 = vpop.f32.mrf.mxu0
        %v497 = vadd.f32 %v307, %v496
        %v498 = vpop.f32.mrf.mxu0
        %v499 = vpop.f32.mrf.mxu0
        %v500 = vadd.f32 %v307, %v499
        %v501 = vpop.f32.mrf.mxu0
        %502 = vmatprep.mubr.bf16.mxu0 0
        %503 = vmatmul.mubr.bf16.gmra.mxu0 %v353
        %v504 = vpop.f32.mrf.mxu0
        %v505 = vadd.f32 %v307, %v504
        %v506 = vpop.f32.mrf.mxu0
        %v507 = vpop.f32.mrf.mxu0
        %v508 = vadd.f32 %v307, %v507
        %v509 = vpop.f32.mrf.mxu0
        %510 = vmatprep.mubr.bf16.mxu0 0
        %511 = vmatmul.mubr.bf16.gmra.mxu0 %v356
        %v512 = vpop.f32.mrf.mxu0
        %v513 = vadd.f32 %v307, %v512
        %v514 = vpop.f32.mrf.mxu0
        %v515 = vpop.f32.mrf.mxu0
        %v516 = vadd.f32 %v307, %v515
        %v517 = vpop.f32.mrf.mxu0
        %518 = vdwg.mxu0
        %v519 = vmax.f32 %v393, 0.0
        %v520 = vmax.f32 %v396, 0.0
        %v521 = vmax.f32 %v401, 0.0
        %v522 = vmax.f32 %v404, 0.0
        %v523 = vmax.f32 %v409, 0.0
        %v524 = vmax.f32 %v412, 0.0
        %v525 = vmax.f32 %v417, 0.0
        %v526 = vmax.f32 %v420, 0.0
        %v527 = vmax.f32 %v425, 0.0
        %v528 = vmax.f32 %v428, 0.0
        %v529 = vmax.f32 %v433, 0.0
        %v530 = vmax.f32 %v436, 0.0
        %v531 = vmax.f32 %v441, 0.0
        %v532 = vmax.f32 %v444, 0.0
        %v533 = vmax.f32 %v449, 0.0
        %v534 = vmax.f32 %v452, 0.0
        %v535 = vmax.f32 %v457, 0.0
        %v536 = vmax.f32 %v460, 0.0
        %v537 = vmax.f32 %v465, 0.0
        %v538 = vmax.f32 %v468, 0.0
        %v539 = vmax.f32 %v473, 0.0
        %v540 = vmax.f32 %v476, 0.0
        %v541 = vmax.f32 %v481, 0.0
        %v542 = vmax.f32 %v484, 0.0
        %v543 = vmax.f32 %v489, 0.0
        %v544 = vmax.f32 %v492, 0.0
        %v545 = vmax.f32 %v497, 0.0
        %v546 = vmax.f32 %v500, 0.0
        %v547 = vmax.f32 %v505, 0.0
        %v548 = vmax.f32 %v508, 0.0
        %v549 = vmax.f32 %v513, 0.0
        %v550 = vmax.f32 %v516, 0.0
        %v551 = vld [vmem:[%s3] sm:$0x1]
        %s552 = sld [smem:[#allocation2]]
        %v553 = vstv %s552
        %vm554 = vcmask 523264
        %v556 = vsel %vm554, %v551, 0
        %v559 = vsel %vm554, %v519, 0
        %v562 = vsel %vm554, %v520, 0
        %v565 = vsel %vm554, %v521, 0
        %v568 = vsel %vm554, %v522, 0
        %v571 = vsel %vm554, %v523, 0
        %v574 = vsel %vm554, %v524, 0
        %v577 = vsel %vm554, %v525, 0
        %v580 = vsel %vm554, %v526, 0
        %v583 = vsel %vm554, %v527, 0
        %v586 = vsel %vm554, %v528, 0
        %v589 = vsel %vm554, %v529, 0
        %v592 = vsel %vm554, %v530, 0
        %v595 = vsel %vm554, %v531, 0
        %v598 = vsel %vm554, %v532, 0
        %v601 = vsel %vm554, %v533, 0
        %v604 = vsel %vm554, %v534, 0
        %v607 = vsel %vm554, %v535, 0
        %v610 = vsel %vm554, %v536, 0
        %v613 = vsel %vm554, %v537, 0
        %v616 = vsel %vm554, %v538, 0
        %v619 = vsel %vm554, %v539, 0
        %v622 = vsel %vm554, %v540, 0
        %v625 = vsel %vm554, %v541, 0
        %v628 = vsel %vm554, %v542, 0
        %v631 = vsel %vm554, %v543, 0
        %v634 = vsel %vm554, %v544, 0
        %v637 = vsel %vm554, %v545, 0
        %v640 = vsel %vm554, %v546, 0
        %v643 = vsel %vm554, %v547, 0
        %v646 = vsel %vm554, %v548, 0
        %v649 = vsel %vm554, %v549, 0
        %v652 = vsel %vm554, %v550, 0
        %654 = vmatprep.subr.mxu0 0.0
        %655 = vmatpush1.xpose.msra.mxu0 %v604
        %656 = vmatprep.subr.mxu0 0.0
        %657 = vmatpush1.xpose.msra.mxu0 %v601
        %658 = vmatprep.subr.mxu0 0.0
        %659 = vmatpush1.xpose.msra.mxu0 %v598
        %660 = vmatprep.subr.mxu0 0.0
        %661 = vmatpush1.xpose.msra.mxu0 %v595
        %662 = vmatprep.subr.mxu0 0.0
        %663 = vmatpush1.xpose.msra.mxu0 %v592
        %664 = vmatprep.subr.mxu0 0.0
        %665 = vmatpush1.xpose.msra.mxu0 %v589
        %666 = vmatprep.subr.mxu0 0.0
        %667 = vmatpush1.xpose.msra.mxu0 %v586
        %668 = vmatprep.subr.mxu0 0.0
        %669 = vmatpush1.xpose.msra.mxu0 %v583
        %670 = vmatprep.subr.mxu0 0.0
        %671 = vmatpush1.xpose.msra.mxu0 %v580
        %672 = vmatprep.subr.mxu0 0.0
        %673 = vmatpush1.xpose.msra.mxu0 %v577
        %674 = vmatprep.subr.mxu0 0.0
        %675 = vmatpush1.xpose.msra.mxu0 %v574
        %676 = vmatprep.subr.mxu0 0.0
        %677 = vmatpush1.xpose.msra.mxu0 %v571
        %678 = vmatprep.subr.mxu0 0.0
        %679 = vmatpush1.xpose.msra.mxu0 %v568
        %680 = vmatprep.subr.mxu0 0.0
        %681 = vmatpush1.xpose.msra.mxu0 %v565
        %682 = vmatprep.subr.mxu0 0.0
        %683 = vmatpush1.xpose.msra.mxu0 %v562
        %684 = vmatprep.subr.mxu0 0.0
        %685 = vmatpush1.xpose.msra.mxu0 %v559
        %686 = vmatprep.subr.mxu0 0.0
        %687 = vmatpush2.xpose.msra.mxu0 %v652
        %688 = vmatprep.subr.mxu0 0.0
        %689 = vmatpush2.xpose.msra.mxu0 %v649
        %690 = vmatprep.subr.mxu0 0.0
        %691 = vmatpush2.xpose.msra.mxu0 %v646
        %692 = vmatprep.subr.mxu0 0.0
        %693 = vmatpush2.xpose.msra.mxu0 %v643
        %694 = vmatprep.subr.mxu0 0.0
        %695 = vmatpush2.xpose.msra.mxu0 %v640
        %696 = vmatprep.subr.mxu0 0.0
        %697 = vmatpush2.xpose.msra.mxu0 %v637
        %698 = vmatprep.subr.mxu0 0.0
        %699 = vmatpush2.xpose.msra.mxu0 %v634
        %700 = vmatprep.subr.mxu0 0.0
        %701 = vmatpush2.xpose.msra.mxu0 %v631
        %702 = vmatprep.subr.mxu0 0.0
        %703 = vmatpush2.xpose.msra.mxu0 %v628
        %704 = vmatprep.subr.mxu0 0.0
        %705 = vmatpush2.xpose.msra.mxu0 %v625
        %706 = vmatprep.subr.mxu0 0.0
        %707 = vmatpush2.xpose.msra.mxu0 %v622
        %708 = vmatprep.subr.mxu0 0.0
        %709 = vmatpush2.xpose.msra.mxu0 %v619
        %710 = vmatprep.subr.mxu0 0.0
        %711 = vmatpush2.xpose.msra.mxu0 %v616
        %712 = vmatprep.subr.mxu0 0.0
        %713 = vmatpush2.xpose.msra.mxu0 %v613
        %714 = vmatprep.subr.mxu0 0.0
        %715 = vmatpush2.xpose.msra.mxu0 %v610
        %716 = vmatprep.subr.mxu0 0.0
        %717 = vmatpush2.xpose.msra.mxu0 %v607
        %718 = vmatprep.mubr.f32.mxu0 0.0
        %719 = vmatmul.mubr.f32.gmra.mxu0 %v556
        %v720 = vpop.f32.mrf.mxu0
        %v721 = vadd.f32 %v553, %v720
        %v722 = vpop.f32.mrf.mxu0
        %v723 = vadd.f32 %v553, %v722
        %724 = vdwg.mxu0
        %v727 = vcombine.low %v721, %v723
        %v729 = vunpack.c.l.s4 1966171168
        %v730 = vunpack.c.0.s8 %v729
        %v731 = vlaneseq
        %v732 = vshrl.u32 %v731, 7
        %v733 = vsub.s32 %v730, %v732
        %v734 = vrot.slane %v727, %v733
        %v736 = vunpack.c.l.s4 1966171168
        %v737 = vunpack.c.0.s8 %v736
        %v738 = vlaneseq
        %v739 = vshrl.u32 %v738, 7
        %v740 = vsub.s32 %v737, %v739
        %v741 = vrot.slane %v734, %v740
        %v743 = vlaneseq
        %vm744 = vcmp.ge.s32.totalorder %v743, 0
        %vm745 = vcmp.lt.s32.totalorder %v743, 256
        %vm746 = vmand %vm744, %vm745
        %747 = vst.msk [vmem:[%s231] sm:$0x3] %vm746, %v741
        %s748 = sand.u32 %s138, 1
        %s749 = scalar_lea.sflag [#allocation4], %s748
        %s750 = sand.u32 %s138, 1
        %s751 = smul.addr %s750, 2
        %s752 = scalar_lea.vmem [#allocation3], %s751
        // Predicated region
        $region41: #{tpu_custom_call.1} parent=39 // pred_check
          %p753 = pneg %p148
        $region42: #{tpu_custom_call.1} parent=39 // pred_check_branch
          %755 = sbr.rel (%p753) target = $region44
        $region43: #{tpu_custom_call.1} parent=39 // pred_region
          %s756 = smul.u32 2, %s20
          %s758 = ssub.s32 32, 32
          %759 = vsyncadd %s749, %s758
          %s760 = smul.addr %s756, 16
          %s761 = scalar_lea.hbm %s5, %s760
          %s763 = sshll.u32 %s752, 4
          %s764 = int_to_ptr.vmem [resolvable:$true] %s763
          %766 = dma.vmem_to_hbm [thread:$0]  %s764, 32, %s761, %s749
        $region44: #{tpu_custom_call.1} parent=39 // pred_fallthru
          _
      $region40: #{tpu_custom_call.1} parent=5 // pred_fallthru
        _
      %p767 = scmp.le.s32.totalorder 2, %s15
      // Predicated region
      $region45: #{tpu_custom_call.1} parent=5 // pred_check
        %p768 = pneg %p767
      $region46: #{tpu_custom_call.1} parent=5 // pred_check_branch
        %770 = sbr.rel (%p768) target = $region48
      $region47: #{tpu_custom_call.1} parent=5 // pred_region
        %s771 = ssub.s32 %s15, 2
        // Predicated region
        $region49: #{tpu_custom_call.1} parent=47 // pred_check
          %p772 = pneg %p154
        $region50: #{tpu_custom_call.1} parent=47 // pred_check_branch
          %774 = sbr.rel (%p772) target = $region52
        $region51: #{tpu_custom_call.1} parent=47 // pred_region
          %s775 = sand.u32 %s139, 1
          %s776 = scalar_lea.sflag [#allocation4], %s775
          %s777 = sand.u32 %s139, 1
          %s778 = smul.addr %s777, 2
          %s779 = scalar_lea.vmem [#allocation3], %s778
          %780 = dma.done %s776, 32
        $region52: #{tpu_custom_call.1} parent=47 // pred_fallthru
          _
      $region48: #{tpu_custom_call.1} parent=5 // pred_fallthru
        _
    $region6: #{tpu_custom_call.1} parent=1 // loop_footer
      %s19 = sadd.s32 1, %s15
    $region7: #{tpu_custom_call.1} parent=1 // loop_footer_branch
      %14 = sbr.rel target = $region3
    $region8: #{tpu_custom_call.1} parent=1 // loop_exit
      _
    %781 = vsyncpa [#allocation4], 1
    %s782 = scalar_lea.sflag [#allocation4], 1
    %783 = vsyncpa %s782, 1

</llo_original>
